<compile_context>
chip_gen: v7x
topology: tpu7x:2x2x1
jax: 0.10.0
libtpu: 0.0.40
codegen_flags: <defaults>
</compile_context>

<pallas_src>
import functools

import jax
import jax.numpy as jnp
from jax import lax
from jax.experimental import pallas as pl
from jax.experimental.pallas import tpu as pltpu


# ---------------------------------------------------------------------------
# Kernels
# ---------------------------------------------------------------------------
def _linear_act_kernel_1k(x_ref, w_ref, b_ref, o_ref, *, slope):
    """Single K block: accumulate directly into the output, no scratch."""
    acc = jnp.dot(x_ref[...], w_ref[...], preferred_element_type=jnp.float32)
    acc = acc + b_ref[...]                       # broadcast bias over rows
    o_ref[...] = jnp.maximum(acc, slope * acc).astype(o_ref.dtype)


def _linear_act_kernel(x_ref, w_ref, b_ref, o_ref, acc_ref, *, slope):
    """K-tiled matmul with an f32 VMEM accumulator resident across K."""
    k = pl.program_id(2)

    @pl.when(k == 0)
    def _init():
        acc_ref[...] = jnp.zeros_like(acc_ref)

    # Standard [M,K] @ [K,N] contraction: both tiles feed the MXU natively
    # (weight was pre-transposed to [in_f, out_f] in the wrapper).
    acc_ref[...] += jnp.dot(x_ref[...], w_ref[...],
                            preferred_element_type=jnp.float32)

    @pl.when(k == pl.num_programs(2) - 1)
    def _epilogue():
        acc = acc_ref[...] + b_ref[...]
        o_ref[...] = jnp.maximum(acc, slope * acc).astype(o_ref.dtype)


# ---------------------------------------------------------------------------
# Wrapper
# ---------------------------------------------------------------------------
@functools.partial(jax.jit, static_argnames=("tm", "tn", "tk", "compute_dtype"))
def linear_layer_forward(x, weight, bias, *, tm=512, tn=512, tk=1024,
                         compute_dtype=None):
    """y = LeakyReLU_0.2(x @ weight.T + bias).

    x: [B, in_f]; weight: [out_f, in_f] (PyTorch layout); bias: [out_f].
    compute_dtype: e.g. jnp.bfloat16 on v6e/v7x for MXU throughput (f32 acc);
    None keeps exact f32 semantics.
    """
    B, in_f = x.shape
    out_f = weight.shape[0]
    out_dtype = x.dtype
    slope = 0.2

    # Pre-transpose weight to [in_f, out_f] once, outside the kernel.  (In
    # production the weight would be stored pre-transposed; here it is a
    # single XLA transpose amortized over the whole kernel.)
    w_t = weight.T
    if compute_dtype is not None:
        x = x.astype(compute_dtype)
        w_t = w_t.astype(compute_dtype)
    b2d = bias.astype(jnp.float32).reshape(1, out_f)   # 2-D, lane-major bias

    # Clamp tiles to the actual extents (full-dim blocks are always legal;
    # otherwise the defaults are (8,128)-aligned by construction).
    tm = min(tm, B)
    tn = min(tn, out_f)
    tk = min(tk, in_f)

    # v7x megacore: keep >= 2 "parallel" programs when possible -- shrink tm
    # for small batches instead of collapsing the parallel grid to 1x1.
    while (pl.cdiv(B, tm) * pl.cdiv(out_f, tn) < 2
           and tm % 16 == 0 and tm >= 16):
        tm //= 2

    grid_k = pl.cdiv(in_f, tk)

    # K-remainder guard: zero-pad K so the ragged last K block never sums
    # unspecified out-of-bounds data into the accumulator.
    if grid_k > 1 and in_f % tk != 0:
        k_padded = grid_k * tk
        x = jnp.pad(x, ((0, 0), (0, k_padded - in_f)))
        w_t = jnp.pad(w_t, ((0, k_padded - in_f), (0, 0)))

    # VMEM budget: double-buffered inputs/outputs + accumulator, with
    # headroom for Mosaic scratch.  Never request full physical VMEM
    # (v7x has only 64 MiB per TensorCore).
    in_bytes = jnp.dtype(x.dtype).itemsize
    out_bytes = jnp.dtype(out_dtype).itemsize
    vmem_need = (2 * (tm * tk + tk * tn) * in_bytes
                 + 2 * tn * 4
                 + 2 * tm * tn * out_bytes
                 + (tm * tn * 4 if grid_k > 1 else 0))
    vmem_limit = int(min(56 * 2 ** 20, max(32 * 2 ** 20, int(vmem_need * 1.5))))

    if grid_k == 1:
        # Fast path: whole K fits in one block -> no scratch, no K grid axis.
        grid = (pl.cdiv(B, tm), pl.cdiv(out_f, tn))
        return pl.pallas_call(
            functools.partial(_linear_act_kernel_1k, slope=slope),
            out_shape=jax.ShapeDtypeStruct((B, out_f), out_dtype),
            grid_spec=pltpu.PrefetchScalarGridSpec(
                num_scalar_prefetch=0,
                grid=grid,
                in_specs=[
                    pl.BlockSpec((tm, tk), lambda i, j: (i, 0)),
                    pl.BlockSpec((tk, tn), lambda i, j: (0, j)),
                    pl.BlockSpec((1, tn), lambda i, j: (0, j)),
                ],
                out_specs=pl.BlockSpec((tm, tn), lambda i, j: (i, j)),
            ),
            compiler_params=pltpu.CompilerParams(
                dimension_semantics=("parallel", "parallel"),
                vmem_limit_bytes=vmem_limit,
            ),
        )(x, w_t, b2d)

    grid = (pl.cdiv(B, tm), pl.cdiv(out_f, tn), grid_k)
    return pl.pallas_call(
        functools.partial(_linear_act_kernel, slope=slope),
        out_shape=jax.ShapeDtypeStruct((B, out_f), out_dtype),
        grid_spec=pltpu.PrefetchScalarGridSpec(
            num_scalar_prefetch=0,
            grid=grid,
            in_specs=[
                pl.BlockSpec((tm, tk), lambda i, j, k: (i, k)),
                pl.BlockSpec((tk, tn), lambda i, j, k: (k, j)),
                # bias block index independent of k -> no re-DMA per K step.
                pl.BlockSpec((1, tn), lambda i, j, k: (0, j)),
            ],
            out_specs=pl.BlockSpec((tm, tn), lambda i, j, k: (i, j)),
            scratch_shapes=[pltpu.VMEM((tm, tn), jnp.float32)],
        ),
        compiler_params=pltpu.CompilerParams(
            dimension_semantics=("parallel", "parallel", "arbitrary"),
            vmem_limit_bytes=vmem_limit,
        ),
    )(x, w_t, b2d)


# ---------------------------------------------------------------------------
# Self-test
# ---------------------------------------------------------------------------
if __name__ == "__main__":
    key = jax.random.PRNGKey(0)

    def _ref(x, w, b):
        y = jnp.dot(x, w.T, precision=lax.Precision.HIGHEST) + b
        return jnp.where(y > 0, y, 0.2 * y)

    # --- Test 1: small shapes consistent with the module (single-K fast path)
    kx, kw, kb, key = jax.random.split(key, 4)
    B, in_f, out_f = 64, 32, 128
    x = jax.random.normal(kx, (B, in_f), dtype=jnp.float32)
    bound = 1.0 / (in_f ** 0.5)
    w = jax.random.uniform(kw, (out_f, in_f), minval=-bound, maxval=bound,
                           dtype=jnp.float32)
    b = jax.random.uniform(kb, (out_f,), minval=-bound, maxval=bound,
                           dtype=jnp.float32)
    out = jax.block_until_ready(linear_layer_forward(x, w, b))
    assert out.shape == (B, out_f)
    assert jnp.allclose(out, _ref(x, w, b), atol=1e-5, rtol=1e-5)

    # --- Test 2: K-tiled path with a K remainder (exercises accumulator,
    #             zero-pad guard, and the megacore tm split).
    kx, kw, kb, key = jax.random.split(key, 4)
    B2, in_f2, out_f2 = 128, 640, 256
    x2 = jax.random.normal(kx, (B2, in_f2), dtype=jnp.float32)
    bound2 = 1.0 / (in_f2 ** 0.5)
    w2 = jax.random.uniform(kw, (out_f2, in_f2), minval=-bound2, maxval=bound2,
                            dtype=jnp.float32)
    b2 = jax.random.uniform(kb, (out_f2,), minval=-bound2, maxval=bound2,
                            dtype=jnp.float32)
    out2 = jax.block_until_ready(
        linear_layer_forward(x2, w2, b2, tm=128, tn=256, tk=512))
    assert out2.shape == (B2, out_f2)
    assert jnp.allclose(out2, _ref(x2, w2, b2), atol=1e-3, rtol=1e-3)

    print("KERNEL_OK")
</pallas_src>

<mosaic_0001>
module attributes {stable_mosaic.version = 11 : i64} {
  func.func @_linear_act_kernel_1k(%arg0: i32, %arg1: i32, %arg2: memref<32x32xf32, #tpu.memory_space<vmem>>, %arg3: memref<32x128xf32, #tpu.memory_space<vmem>>, %arg4: memref<1x128xf32, #tpu.memory_space<vmem>>, %arg5: memref<32x128xf32, #tpu.memory_space<vmem>>) attributes {dimension_semantics = [#tpu.dimension_semantics<parallel>, #tpu.dimension_semantics<parallel>], iteration_bounds = array<i64: 2, 1>, scalar_prefetch = 0 : i64, scratch_operands = 0 : i64, tpu.core_type = #tpu.core_type<tc>, window_params = [{transform_indices = @transform_0, window_bounds = array<i64: 32, 32>}, {transform_indices = @transform_1, window_bounds = array<i64: 32, 128>}, {transform_indices = @transform_2, window_bounds = array<i64: 1, 128>}, {transform_indices = @transform_3, window_bounds = array<i64: 32, 128>}]} {
    %c0 = arith.constant 0 : index
    %c0_0 = arith.constant 0 : index
    %0 = vector.load %arg2[%c0, %c0_0] : memref<32x32xf32, #tpu.memory_space<vmem>>, vector<32x32xf32>
    %c0_1 = arith.constant 0 : index
    %c0_2 = arith.constant 0 : index
    %1 = vector.load %arg3[%c0_1, %c0_2] : memref<32x128xf32, #tpu.memory_space<vmem>>, vector<32x128xf32>
    %cst = arith.constant dense<0.000000e+00> : vector<32x128xf32>
    %2 = tpu.matmul %0, %1, %cst {dimension_numbers = #tpu.dot_dimension_numbers<[1], [0], [0], [1], [0, 0, 1, 1], [], []>} : vector<32x32xf32>, vector<32x128xf32>, vector<32x128xf32> -> vector<32x128xf32>
    %c0_3 = arith.constant 0 : index
    %c0_4 = arith.constant 0 : index
    %3 = vector.load %arg4[%c0_3, %c0_4] : memref<1x128xf32, #tpu.memory_space<vmem>>, vector<1x128xf32>
    %4 = vector.broadcast %3 : vector<1x128xf32> to vector<32x128xf32>
    %5 = arith.addf %2, %4 : vector<32x128xf32>
    %cst_5 = arith.constant 2.000000e-01 : f32
    %6 = vector.broadcast %cst_5 : f32 to vector<32x128xf32>
    %7 = arith.mulf %6, %5 : vector<32x128xf32>
    %8 = arith.maximumf %5, %7 : vector<32x128xf32>
    %c0_6 = arith.constant 0 : index
    %c0_7 = arith.constant 0 : index
    %9 = vector.load %arg5[%c0_6, %c0_7] : memref<32x128xf32, #tpu.memory_space<vmem>>, vector<32x128xf32>
    tpu.vector_store %arg5[%c0_6, %c0_7], %8 {strides = array<i32>} : memref<32x128xf32, #tpu.memory_space<vmem>>, vector<32x128xf32>,
    return
  }
  func.func @transform_0(%arg0: i32, %arg1: i32) -> (i32, i32) {
    %c0_i32 = arith.constant 0 : i32
    %c0_i32_0 = arith.constant 0 : i32
    return %arg0, %c0_i32 : i32, i32
  }
  func.func @transform_1(%arg0: i32, %arg1: i32) -> (i32, i32) {
    %c0_i32 = arith.constant 0 : i32
    %c0_i32_0 = arith.constant 0 : i32
    return %c0_i32, %arg1 : i32, i32
  }
  func.func @transform_2(%arg0: i32, %arg1: i32) -> (i32, i32) {
    %c0_i32 = arith.constant 0 : i32
    %c0_i32_0 = arith.constant 0 : i32
    return %c0_i32, %arg1 : i32, i32
  }
  func.func @transform_3(%arg0: i32, %arg1: i32) -> (i32, i32) {
    %c0_i32 = arith.constant 0 : i32
    return %arg0, %arg1 : i32, i32
  }
}

</mosaic_0001>

<llo_original>
// kernel: linear_layer_forward.1
$region0: #{linear_layer_forward.1}
  #allocation0 [shape = 'u32[]', space=smem, size = 0x4, offset = 0x4, fixed_abs, tag = 'smem constant byte address 0x4 - core index']
  #allocation1 [shape = 'u32[144,128]{1,0:T(1,128)}', space=vmem, size = 0x12000, scoped, tag = 'internal scratch']
  %s0 = inlined_call_operand.vmem [shape: f32[64,32], index: 0, kind: input, shape index: {}]
  %s1 = inlined_call_operand.vmem [shape: f32[32,128], index: 1, kind: input, shape index: {}]
  %s2 = inlined_call_operand.vmem [shape: f32[1,128], index: 2, kind: input, shape index: {}]
  %s3 = inlined_call_operand.hbm [shape: f32[64,128], index: 3, kind: output, shape index: {}]
  %s4 = sld [smem:[#allocation0]]
  $region45: #{linear_layer_forward.1} parent=0
    _
  %s6 = ssub.s32 1, %s4
  %s7 = scalar_select 0, %s6, %s4
  $region1: #{linear_layer_forward.1} parent=0
    #allocation2 [shape = 'u8[32768]{0}', space=vmem, size = 0x8000, scoped, tag = 'output window, operand 0']
    #allocation3 [shape = 's32[2]{0}', space=sflag, size = 0x8, scoped, tag = 'scoped memory for linear_layer_forward.1']
    %8 = vsyncpa [#allocation3], 0
    %s9 = scalar_lea.sflag [#allocation3], 1
    %10 = vsyncpa %s9, 0
    loop: start=0, step=1, limit=4
    $region2: #{linear_layer_forward.1} parent=1 // loop_pre_header
      _
    $region3: #{linear_layer_forward.1} parent=1 // loop_header
      %s12 = sphi 0, %s16
      %p13 = scmp.ge.s32.totalorder %s12, 4
      %s19 = sphi 0, %s31
      %s20 = sphi 0, %s27
      %s21 = sphi 0, %s19
      %s22 = sphi 0, %s20
      %s23 = sphi 0, %s21
      %s24 = sphi 0, %s22
      %s34 = sphi 0, %s36
      %s37 = sphi 0, %s34
      %s38 = sphi 0, %s37
      %s54 = sphi 0, %s38
      %s60 = sphi 0, %s62
      %s63 = sphi 0, %s60
      %s64 = sphi 0, %s63
      %s80 = sphi 0, %s64
      %s86 = sphi 0, %s88
      %s89 = sphi 0, %s86
      %s90 = sphi 0, %s89
      %s106 = sphi 0, %s90
      %s114 = sphi 0, %s116
      %s117 = sphi 0, %s114
      %s118 = sphi 0, %s117
      %s134 = sphi 0, %s118
    $region4: #{linear_layer_forward.1} parent=1 // loop_header_branch
      %15 = sbr.rel (%p13) target = $region8
    $region5: #{linear_layer_forward.1} parent=1 // loop_body
      %s17 = ssub.s32 %s12, 1
      %s18 = ssub.s32 %s12, 2
      %s25 = sadd.s32 1, %s20
      %p26 = scmp.ge.s32.totalorder %s25, 1
      %s27 = scalar_select %p26, 0, %s25
      %s28 = sadd.s32 1, %s19
      %s29 = scalar_select %p26, %s28, %s19
      %p30 = scmp.ge.s32.totalorder %s29, 2
      %s31 = scalar_select %p30, 0, %s29
      %s32 = ssub.s32 %s19, %s31
      %p33 = scmp.eq.s32.totalorder %s32, 0
      %s35 = sadd.s32 %s34, 1
      %s36 = scalar_select %p33, %s34, %s35
      %p39 = pneg %p33
      %p40 = scmp.eq.s32.totalorder %s12, 1
      %p41 = por %p39, %p40
      %p42 = scmp.ne.s32.totalorder %s34, %s37
      %p43 = scmp.eq.s32.totalorder %s12, 0
      %p44 = por %p42, %p43
      %p45 = scmp.ne.s32.totalorder %s34, %s37
      %p46 = scmp.eq.s32.totalorder %s17, 1
      %p47 = por %p45, %p46
      %p48 = scmp.ne.s32.totalorder %s37, %s38
      %p49 = scmp.eq.s32.totalorder %s17, 0
      %p50 = por %p48, %p49
      %p51 = scmp.ne.s32.totalorder %s37, %s38
      %p52 = scmp.eq.s32.totalorder %s18, 1
      %p53 = por %p51, %p52
      %p55 = scmp.ne.s32.totalorder %s38, %s54
      %p56 = scmp.eq.s32.totalorder %s18, 0
      %p57 = por %p55, %p56
      %s58 = ssub.s32 %s20, %s27
      %p59 = scmp.eq.s32.totalorder %s58, 0
      %s61 = sadd.s32 %s60, 1
      %s62 = scalar_select %p59, %s60, %s61
      %p65 = pneg %p59
      %p66 = scmp.eq.s32.totalorder %s12, 1
      %p67 = por %p65, %p66
      %p68 = scmp.ne.s32.totalorder %s60, %s63
      %p69 = scmp.eq.s32.totalorder %s12, 0
      %p70 = por %p68, %p69
      %p71 = scmp.ne.s32.totalorder %s60, %s63
      %p72 = scmp.eq.s32.totalorder %s17, 1
      %p73 = por %p71, %p72
      %p74 = scmp.ne.s32.totalorder %s63, %s64
      %p75 = scmp.eq.s32.totalorder %s17, 0
      %p76 = por %p74, %p75
      %p77 = scmp.ne.s32.totalorder %s63, %s64
      %p78 = scmp.eq.s32.totalorder %s18, 1
      %p79 = por %p77, %p78
      %p81 = scmp.ne.s32.totalorder %s64, %s80
      %p82 = scmp.eq.s32.totalorder %s18, 0
      %p83 = por %p81, %p82
      %s84 = ssub.s32 %s20, %s27
      %p85 = scmp.eq.s32.totalorder %s84, 0
      %s87 = sadd.s32 %s86, 1
      %s88 = scalar_select %p85, %s86, %s87
      %p91 = pneg %p85
      %p92 = scmp.eq.s32.totalorder %s12, 1
      %p93 = por %p91, %p92
      %p94 = scmp.ne.s32.totalorder %s86, %s89
      %p95 = scmp.eq.s32.totalorder %s12, 0
      %p96 = por %p94, %p95
      %p97 = scmp.ne.s32.totalorder %s86, %s89
      %p98 = scmp.eq.s32.totalorder %s17, 1
      %p99 = por %p97, %p98
      %p100 = scmp.ne.s32.totalorder %s89, %s90
      %p101 = scmp.eq.s32.totalorder %s17, 0
      %p102 = por %p100, %p101
      %p103 = scmp.ne.s32.totalorder %s89, %s90
      %p104 = scmp.eq.s32.totalorder %s18, 1
      %p105 = por %p103, %p104
      %p107 = scmp.ne.s32.totalorder %s90, %s106
      %p108 = scmp.eq.s32.totalorder %s18, 0
      %p109 = por %p107, %p108
      %s110 = ssub.s32 %s19, %s31
      %s111 = ssub.s32 %s20, %s27
      %s112 = sor.u32 %s110, %s111
      %p113 = scmp.eq.s32.totalorder %s112, 0
      %s115 = sadd.s32 %s114, 1
      %s116 = scalar_select %p113, %s114, %s115
      %p119 = pneg %p113
      %p120 = scmp.eq.s32.totalorder %s12, 1
      %p121 = por %p119, %p120
      %p122 = scmp.ne.s32.totalorder %s114, %s117
      %p123 = scmp.eq.s32.totalorder %s12, 0
      %p124 = por %p122, %p123
      %p125 = scmp.ne.s32.totalorder %s114, %s117
      %p126 = scmp.eq.s32.totalorder %s17, 1
      %p127 = por %p125, %p126
      %p128 = scmp.ne.s32.totalorder %s117, %s118
      %p129 = scmp.eq.s32.totalorder %s17, 0
      %p130 = por %p128, %p129
      %p131 = scmp.ne.s32.totalorder %s117, %s118
      %p132 = scmp.eq.s32.totalorder %s18, 1
      %p133 = por %p131, %p132
      %p135 = scmp.ne.s32.totalorder %s118, %s134
      %p136 = scmp.eq.s32.totalorder %s18, 0
      %p137 = por %p135, %p136
      %p138 = scmp.le.s32.totalorder 1, %s12
      %p139 = scmp.lt.s32.totalorder %s12, 3
      %p140 = pnand %p138, %p139
      %p141 = pneg %p140
      // Predicated region
      $region9: #{linear_layer_forward.1} parent=5 // pred_check
        _
      $region10: #{linear_layer_forward.1} parent=5 // pred_check_branch
        %143 = sbr.rel (%p140) target = $region12
      $region11: #{linear_layer_forward.1} parent=5 // pred_region
        %s144 = ssub.s32 %s12, 1
        // Predicated region
        $region13: #{linear_layer_forward.1} parent=11 // pred_check
          %p145 = pneg %p76
        $region14: #{linear_layer_forward.1} parent=11 // pred_check_branch
          %147 = sbr.rel (%p145) target = $region16
        $region15: #{linear_layer_forward.1} parent=11 // pred_region
          %p148 = scmp.lt.s32.totalorder %s22, 0
          %s149 = scalar_select %p148, %s22, 0
          %s150 = smul.addr %s149, 8
          %s151 = scalar_lea.vmem %s1, %s150
        $region16: #{linear_layer_forward.1} parent=11 // pred_fallthru
          _
        // Predicated region
        $region17: #{linear_layer_forward.1} parent=11 // pred_check
          %p152 = pneg %p102
        $region18: #{linear_layer_forward.1} parent=11 // pred_check_branch
          %154 = sbr.rel (%p152) target = $region20
        $region19: #{linear_layer_forward.1} parent=11 // pred_region
          %p155 = scmp.lt.s32.totalorder %s22, 0
          %s156 = scalar_select %p155, %s22, 0
          %s157 = scalar_lea.vmem %s2, %s156
        $region20: #{linear_layer_forward.1} parent=11 // pred_fallthru
          _
      $region12: #{linear_layer_forward.1} parent=5 // pred_fallthru
        _
      %p158 = scmp.lt.s32.totalorder %s12, 2
      // Predicated region
      $region21: #{linear_layer_forward.1} parent=5 // pred_check
        %p159 = pneg %p158
      $region22: #{linear_layer_forward.1} parent=5 // pred_check_branch
        %161 = sbr.rel (%p159) target = $region24
      $region23: #{linear_layer_forward.1} parent=5 // pred_region
        // Predicated region
        $region25: #{linear_layer_forward.1} parent=23 // pred_check
          %p162 = pneg %p44
        $region26: #{linear_layer_forward.1} parent=23 // pred_check_branch
          %164 = sbr.rel (%p162) target = $region28
        $region27: #{linear_layer_forward.1} parent=23 // pred_region
          %s165 = smul.u32 4, %s19
          %p166 = scmp.lt.s32.totalorder %s165, 7
          %s167 = scalar_select %p166, %s165, 7
          %s168 = smul.addr %s167, 8
          %s169 = scalar_lea.vmem %s0, %s168
          %s170 = smul.u32 4, %s19
        $region28: #{linear_layer_forward.1} parent=23 // pred_fallthru
          _
      $region24: #{linear_layer_forward.1} parent=5 // pred_fallthru
        _
      %p171 = scmp.le.s32.totalorder 1, %s12
      %p172 = scmp.lt.s32.totalorder %s12, 3
      %p173 = pnand %p171, %p172
      %p174 = pneg %p173
      // Predicated region
      $region29: #{linear_layer_forward.1} parent=5 // pred_check
        _
      $region30: #{linear_layer_forward.1} parent=5 // pred_check_branch
        %176 = sbr.rel (%p173) target = $region32
      $region31: #{linear_layer_forward.1} parent=5 // pred_region
        %s177 = ssub.s32 %s12, 1
        %s178 = smul.u32 4, %s21
        %p179 = scmp.lt.s32.totalorder %s178, 7
        %s180 = scalar_select %p179, %s178, 7
        %s181 = smul.addr %s180, 8
        %s182 = scalar_lea.vmem %s0, %s181
        %p183 = pneg %p50
        %p184 = pneg %p47
        %p185 = scmp.lt.s32.totalorder %s22, 0
        %s186 = scalar_select %p185, %s22, 0
        %s187 = smul.addr %s186, 8
        %s188 = scalar_lea.vmem %s1, %s187
        %p189 = pneg %p76
        %p190 = pneg %p73
        %p191 = scmp.lt.s32.totalorder %s22, 0
        %s192 = scalar_select %p191, %s22, 0
        %s193 = scalar_lea.vmem %s2, %s192
        %p194 = pneg %p102
        %p195 = pneg %p99
        %p196 = pneg %p130
        %p197 = pneg %p127
        %s198 = sand.u32 %s117, 1
        %s199 = scalar_lea.sflag [#allocation3], %s198
        %s200 = sand.u32 %s117, 1
        %s201 = smul.addr %s200, 32
        %s202 = scalar_lea.vmem [#allocation2], %s201
        %s203 = smul.u32 4, %s21
        %p204 = scmp.lt.s32.totalorder %s203, 7
        %s205 = scalar_select %p204, %s203, 7
        %s206 = smul.addr %s205, 8
        %s207 = scalar_lea.vmem %s0, %s206
        %s208 = smul.u32 4, %s21
        %p209 = scmp.lt.s32.totalorder %s22, 0
        %s210 = scalar_select %p209, %s22, 0
        %s211 = smul.addr %s210, 8
        %s212 = scalar_lea.vmem %s1, %s211
        %p213 = scmp.lt.s32.totalorder %s22, 0
        %s214 = scalar_select %p213, %s22, 0
        %s215 = scalar_lea.vmem %s2, %s214
        %s216 = smul.u32 4, %s21
        %v217 = vld [vmem:[%s207] sm:$0xff]
        %v218 = vld [vmem:[%s207 + $0x8] sm:$0xff]
        %v219 = vld [vmem:[%s207 + $0x10] sm:$0xff]
        %v220 = vld [vmem:[%s207 + $0x18] sm:$0xff]
        %v221 = vld [vmem:[%s212] sm:$0xff]
        %v222 = vld [vmem:[%s212 + $0x8] sm:$0xff]
        %v223 = vld [vmem:[%s212 + $0x10] sm:$0xff]
        %v224 = vld [vmem:[%s212 + $0x18] sm:$0xff]
        %v225 = vld [vmem:[%s215] sm:$0x1]
        %v227 = vlaneseq
        %v228 = vshrl.u32 %v227, 7
        %v229 = vsub.s32 0, %v228
        %v230 = vrot.slane %v225, %v229
        %vm232 = vcmask 261120
        %v234 = vsel %vm232, %v217, 0
        %v237 = vsel %vm232, %v218, 0
        %v240 = vsel %vm232, %v219, 0
        %v243 = vsel %vm232, %v220, 0
        %245 = vmatprep.subr.mxu0 0.0
        %246 = vmatpush1.msra.mxu0 %v221
        %247 = vmatprep.subr.mxu0 0.0
        %248 = vmatpush1.msra.mxu0 %v222
        %249 = vmatprep.subr.mxu0 0.0
        %250 = vmatpush1.msra.mxu0 %v223
        %251 = vmatprep.subr.mxu0 0.0
        %252 = vmatpush1.msra.mxu0 %v224
        %253 = vmatprep.subr.mxu0 0.0
        %254 = vmatpush1.msra.mxu0 0.0
        %255 = vmatprep.subr.mxu0 0.0
        %256 = vmatpush1.msra.mxu0 0.0
        %257 = vmatprep.subr.mxu0 0.0
        %258 = vmatpush1.msra.mxu0 0.0
        %259 = vmatprep.subr.mxu0 0.0
        %260 = vmatpush1.msra.mxu0 0.0
        %261 = vmatprep.subr.mxu0 0.0
        %262 = vmatpush1.msra.mxu0 0.0
        %263 = vmatprep.subr.mxu0 0.0
        %264 = vmatpush1.msra.mxu0 0.0
        %265 = vmatprep.subr.mxu0 0.0
        %266 = vmatpush1.msra.mxu0 0.0
        %267 = vmatprep.subr.mxu0 0.0
        %268 = vmatpush1.msra.mxu0 0.0
        %269 = vmatprep.subr.mxu0 0.0
        %270 = vmatpush1.msra.mxu0 0.0
        %271 = vmatprep.subr.mxu0 0.0
        %272 = vmatpush1.msra.mxu0 0.0
        %273 = vmatprep.subr.mxu0 0.0
        %274 = vmatpush1.msra.mxu0 0.0
        %275 = vmatprep.subr.mxu0 0.0
        %276 = vmatpush1.msra.mxu0 0.0
        %277 = vmatprep.subr.mxu0 0.0
        %278 = vmatpush1.msra.mxu0 0.0
        %279 = vmatprep.subr.mxu0 0.0
        %280 = vmatpush1.msra.mxu0 0.0
        %281 = vmatprep.subr.mxu0 0.0
        %282 = vmatpush1.msra.mxu0 0.0
        %283 = vmatprep.subr.mxu0 0.0
        %284 = vmatpush1.msra.mxu0 0.0
        %285 = vmatprep.subr.mxu0 0.0
        %286 = vmatpush1.msra.mxu0 0.0
        %287 = vmatprep.subr.mxu0 0.0
        %288 = vmatpush1.msra.mxu0 0.0
        %289 = vmatprep.subr.mxu0 0.0
        %290 = vmatpush1.msra.mxu0 0.0
        %291 = vmatprep.subr.mxu0 0.0
        %292 = vmatpush1.msra.mxu0 0.0
        %293 = vmatprep.subr.mxu0 0.0
        %294 = vmatpush1.msra.mxu0 0.0
        %295 = vmatprep.subr.mxu0 0.0
        %296 = vmatpush1.msra.mxu0 0.0
        %297 = vmatprep.subr.mxu0 0.0
        %298 = vmatpush1.msra.mxu0 0.0
        %299 = vmatprep.subr.mxu0 0.0
        %300 = vmatpush1.msra.mxu0 0.0
        %301 = vmatprep.subr.mxu0 0.0
        %302 = vmatpush1.msra.mxu0 0.0
        %303 = vmatprep.subr.mxu0 0.0
        %304 = vmatpush1.msra.mxu0 0.0
        %305 = vmatprep.subr.mxu0 0.0
        %306 = vmatpush1.msra.mxu0 0.0
        %307 = vmatprep.subr.mxu0 0.0
        %308 = vmatpush1.msra.mxu0 0.0
        %309 = vmatprep.mubr.f32.mxu0 0.0
        %310 = vmatmul.mubr.f32.gmra.mrb[0].mxu0 %v234
        %v311 = vpop.f32.mrb[0].mxu0
        %v312 = vadd.f32 %v230, %v311
        %v313 = vpop.f32.mrb[0].mxu0
        %314 = vmatprep.mubr.f32.mxu0 0.0
        %315 = vmatmul.mubr.f32.gmra.mrb[0].mxu0 %v237
        %v316 = vpop.f32.mrb[0].mxu0
        %v317 = vadd.f32 %v230, %v316
        %v318 = vpop.f32.mrb[0].mxu0
        %319 = vmatprep.mubr.f32.mxu0 0.0
        %320 = vmatmul.mubr.f32.gmra.mrb[0].mxu0 %v240
        %v321 = vpop.f32.mrb[0].mxu0
        %v322 = vadd.f32 %v230, %v321
        %v323 = vpop.f32.mrb[0].mxu0
        %324 = vmatprep.mubr.f32.mxu0 0.0
        %325 = vmatmul.mubr.f32.gmra.mrb[0].mxu0 %v243
        %v326 = vpop.f32.mrb[0].mxu0
        %v327 = vadd.f32 %v230, %v326
        %v328 = vpop.f32.mrb[0].mxu0
        %329 = vdwg.mxu0
        %v330 = vmul.f32 %v312, 0.2
        %v331 = vmul.f32 %v317, 0.2
        %v332 = vmul.f32 %v322, 0.2
        %v333 = vmul.f32 %v327, 0.2
        %v334 = vmax.f32 %v312, %v330
        %v335 = vmax.f32 %v317, %v331
        %v336 = vmax.f32 %v322, %v332
        %v337 = vmax.f32 %v327, %v333
        %338 = vst [vmem:[%s202] sm:$0xff] %v334
        %339 = vst [vmem:[%s202 + $0x8] sm:$0xff] %v335
        %340 = vst [vmem:[%s202 + $0x10] sm:$0xff] %v336
        %341 = vst [vmem:[%s202 + $0x18] sm:$0xff] %v337
        %s342 = sand.u32 %s117, 1
        %s343 = scalar_lea.sflag [#allocation3], %s342
        %s344 = sand.u32 %s117, 1
        %s345 = smul.addr %s344, 32
        %s346 = scalar_lea.vmem [#allocation2], %s345
        // Predicated region
        $region33: #{linear_layer_forward.1} parent=31 // pred_check
          %p347 = pneg %p127
        $region34: #{linear_layer_forward.1} parent=31 // pred_check_branch
          %349 = sbr.rel (%p347) target = $region36
        $region35: #{linear_layer_forward.1} parent=31 // pred_region
          %s350 = smul.u32 4, %s21
          %s352 = ssub.s32 512, 512
          %353 = vsyncadd %s343, %s352
          %s354 = sadd.s32 %s22, %s350
          %s355 = smul.addr %s354, 128
          %s356 = scalar_lea.hbm %s3, %s355
          %s357 = sshll.u32 %s346, 4
          %s358 = int_to_ptr.vmem [resolvable:$true] %s357
          %363 = dma.vmem_to_hbm [thread:$0]  %s358, 512, %s356, %s343, 128, 128, 8
        $region36: #{linear_layer_forward.1} parent=31 // pred_fallthru
          _
      $region32: #{linear_layer_forward.1} parent=5 // pred_fallthru
        _
      %p364 = scmp.le.s32.totalorder 2, %s12
      // Predicated region
      $region37: #{linear_layer_forward.1} parent=5 // pred_check
        %p365 = pneg %p364
      $region38: #{linear_layer_forward.1} parent=5 // pred_check_branch
        %367 = sbr.rel (%p365) target = $region40
      $region39: #{linear_layer_forward.1} parent=5 // pred_region
        %s368 = ssub.s32 %s12, 2
        // Predicated region
        $region41: #{linear_layer_forward.1} parent=39 // pred_check
          %p369 = pneg %p133
        $region42: #{linear_layer_forward.1} parent=39 // pred_check_branch
          %371 = sbr.rel (%p369) target = $region44
        $region43: #{linear_layer_forward.1} parent=39 // pred_region
          %s372 = sand.u32 %s118, 1
          %s373 = scalar_lea.sflag [#allocation3], %s372
          %s374 = sand.u32 %s118, 1
          %s375 = smul.addr %s374, 32
          %s376 = scalar_lea.vmem [#allocation2], %s375
          %377 = dma.done %s373, 512
        $region44: #{linear_layer_forward.1} parent=39 // pred_fallthru
          _
      $region40: #{linear_layer_forward.1} parent=5 // pred_fallthru
        _
    $region6: #{linear_layer_forward.1} parent=1 // loop_footer
      %s16 = sadd.s32 1, %s12
    $region7: #{linear_layer_forward.1} parent=1 // loop_footer_branch
      %11 = sbr.rel target = $region3
    $region8: #{linear_layer_forward.1} parent=1 // loop_exit
      _
    %378 = vsyncpa [#allocation3], 1
    %s379 = scalar_lea.sflag [#allocation3], 1
    %380 = vsyncpa %s379, 1

</llo_original>
